<compile_context>
chip_gen: v7x
topology: tpu7x:2x2x1
jax: 0.10.0
libtpu: 0.0.40
codegen_flags: <defaults>
</compile_context>

<pallas_src>
import numpy as np
import jax
import jax.numpy as jnp
from jax.experimental import pallas as pl
from jax.experimental.pallas import tpu as pltpu


_ROW_ALIGN = 16     # bf16 sublane packing: (16, 128) vreg tiles
_LANE_ALIGN = 256   # v6e/v7x MXU is 2x256x256; 256-aligned K/N avoids half-passes


def _round_up(x, m):
    return ((int(x) + m - 1) // m) * m


def _vmem_budget_and_cap():
    """Generation-aware VMEM plan: ~70% of physical VMEM as the tiling budget,
    ~92% as the hard vmem_limit cap (v5e/v6e: 128 MiB, v7x: 64 MiB/TC)."""
    cap = 64 * 2 ** 20                        # conservative fallback (v7x)
    try:
        info = pltpu.get_tpu_info()
        c = getattr(info, "vmem_capacity_bytes", None)
        if c:
            cap = int(c)
    except Exception:
        pass
    return int(0.70 * cap), int(0.92 * cap)


# ----------------------------------------------------------------------------
# Host-side glue: Lanczos-4 interpolation matrices (deterministic, numpy)
# ----------------------------------------------------------------------------
def _lanczos4_kernel(x, a=4):
    x = np.asarray(x, dtype=np.float64)
    small = np.abs(x) < 1e-12
    xs = np.where(small, 1.0, x)
    val = a * np.sin(np.pi * xs) * np.sin(np.pi * xs / a) / (np.pi ** 2 * xs ** 2)
    val = np.where(small, 1.0, val)
    val = np.where(np.abs(x) >= a, 0.0, val)
    return val


def lanczos4_weight_matrix(in_size, out_size):
    """Dense (out_size, in_size) Lanczos-4 interpolation matrix, cv2-style mapping."""
    a = 4
    scale = in_size / out_size
    dst = np.arange(out_size)
    x = (dst + 0.5) * scale - 0.5
    sx = np.floor(x).astype(np.int64)
    fx = x - sx
    W = np.zeros((out_size, in_size), dtype=np.float64)
    for t in range(2 * a):                                 # 8 taps: sx-3 .. sx+4
        idx = np.clip(sx - (a - 1) + t, 0, in_size - 1)    # border replicate
        w = _lanczos4_kernel(fx - (t - (a - 1)), a)
        np.add.at(W, (dst, idx), w)
    W /= W.sum(axis=1, keepdims=True)
    return W                                               # float64


# ----------------------------------------------------------------------------
# Band analysis + banded-weight construction (host-side glue)
# ----------------------------------------------------------------------------
def _row_tile_bands(Wrow, TM, n_i):
    """Per output-row tile: [lo, hi] of input rows touched (nonzero band)."""
    new_H, _ = Wrow.shape
    bands = []
    for i in range(n_i):
        r0, r1 = i * TM, min((i + 1) * TM, new_H)
        used = np.abs(Wrow[r0:r1]).sum(axis=0)
        nz = np.nonzero(used > 0)[0]
        bands.append((int(nz.min()), int(nz.max())))
    return bands


def _col_tile_lane_bands(Wcol, TNC, n_j, C):
    """Per output-lane tile: [lo, hi] of input lanes (channel-interleaved) touched."""
    new_W, _ = Wcol.shape
    L = new_W * C
    bands = []
    for j in range(n_j):
        l0, l1 = j * TNC, min((j + 1) * TNC, L)
        p0, p1 = l0 // C, (l1 - 1) // C
        used = np.abs(Wcol[p0:p1 + 1]).sum(axis=0)
        nz = np.nonzero(used > 0)[0]
        bands.append((int(nz.min()) * C, int(nz.max()) * C + (C - 1)))
    return bands


def _build_row_banded(Wrow, TM, n_i, new_Hp, KH):
    """Banded row weights: two (new_Hp, KH) halves + per-tile input row-block index."""
    new_H, H = Wrow.shape
    wlo = np.zeros((new_Hp, KH), np.float32)
    whi = np.zeros((new_Hp, KH), np.float32)
    rblk = np.zeros((n_i,), np.int32)
    for i, (lo, hi) in enumerate(_row_tile_bands(Wrow, TM, n_i)):
        blk = lo // KH
        # Guaranteed: KH >= max band span -> band fits in two KH-aligned blocks.
        assert hi < (blk + 2) * KH, "row band does not fit in two aligned blocks"
        rblk[i] = blk
        base = blk * KH
        r0, r1 = i * TM, min((i + 1) * TM, new_H)
        seg = Wrow[r0:r1, base:min(base + 2 * KH, H)]
        win = np.zeros((r1 - r0, 2 * KH), np.float64)
        win[:, :seg.shape[1]] = seg
        wlo[r0:r1] = win[:, :KH]
        whi[r0:r1] = win[:, KH:]
    return wlo, whi, rblk


def _build_col_banded(Wcol, TNC, n_j, C, KWC):
    """Banded, channel-interleaved (block-diagonal in C) column weights.

    Two (n_j*KWC, TNC) halves + per-tile input lane-block index.
    Output lane l = n*C + c of tile j lives at column (l - j*TNC).
    """
    new_W, _ = Wcol.shape
    L = new_W * C
    wlo = np.zeros((n_j * KWC, TNC), np.float32)
    whi = np.zeros((n_j * KWC, TNC), np.float32)
    cblk = np.zeros((n_j,), np.int32)
    for j, (lane_lo, lane_hi) in enumerate(_col_tile_lane_bands(Wcol, TNC, n_j, C)):
        blk = lane_lo // KWC
        # Guaranteed: KWC >= max band span -> band fits in two KWC-aligned blocks.
        assert lane_hi < (blk + 2) * KWC, "col band does not fit in two aligned blocks"
        cblk[j] = blk
        base = blk * KWC
        for out_lane in range(j * TNC, min((j + 1) * TNC, L)):
            n, c = divmod(out_lane, C)
            d = out_lane - j * TNC
            for in_px in np.nonzero(np.abs(Wcol[n]) > 0)[0]:
                off = in_px * C + c - base
                if off < KWC:
                    wlo[j * KWC + off, d] += Wcol[n, in_px]
                else:
                    whi[j * KWC + (off - KWC), d] += Wcol[n, in_px]
    return wlo, whi, cblk


def _choose_tiles(Wrow, Wcol, C, tm_target, tnc_target, vmem_budget, out_itemsize):
    """Pick (TM, TNC) output tile sizes and resulting band-block sizes (KH, KWC),
    shrinking until the per-step footprint (including the in-kernel f32
    intermediates) fits the VMEM budget."""
    new_H, _ = Wrow.shape
    new_W, _ = Wcol.shape
    L = new_W * C
    TM = min(_round_up(tm_target, _ROW_ALIGN), _round_up(new_H, _ROW_ALIGN))
    TNC = min(_round_up(tnc_target, _LANE_ALIGN), _round_up(L, _LANE_ALIGN))
    while True:
        n_i = -(-new_H // TM)
        n_j = -(-L // TNC)
        KH = max(_ROW_ALIGN, _round_up(
            max(hi - lo + 1 for lo, hi in _row_tile_bands(Wrow, TM, n_i)),
            _ROW_ALIGN))
        KWC = max(_LANE_ALIGN, _round_up(
            max(hi - lo + 1 for lo, hi in _col_tile_lane_bands(Wcol, TNC, n_j, C)),
            _LANE_ALIGN))
        est = (2 * (2 * TM * KH * 2              # banded row weights (bf16 lo+hi), 2x buffered
                    + 2 * KWC * TNC * 2          # banded col weights (bf16 lo+hi), 2x buffered
                    + 4 * KH * KWC * 2           # 2x2 image blocks (bf16), 2x buffered
                    + TM * TNC * out_itemsize)   # output tile, 2x buffered
               + TM * KWC * 6                    # in-kernel row-pass temp (f32 + bf16 copy)
               + TM * TNC * 4)                   # in-kernel f32 accumulator
        if est <= vmem_budget or (TM <= _ROW_ALIGN and TNC <= _LANE_ALIGN):
            return TM, TNC, KH, KWC, n_i, n_j, est
        # Shrink TNC first so KH (the row-pass MXU contraction dim) stays large.
        if TNC > _LANE_ALIGN:
            TNC = max(_LANE_ALIGN, _round_up(TNC // 2, _LANE_ALIGN))
        else:
            TM = max(_ROW_ALIGN, _round_up(TM // 2, _ROW_ALIGN))


# ----------------------------------------------------------------------------
# Pallas kernel: one output tile = 4 row-pass + 2 col-pass bf16 MXU matmuls,
# f32 accumulation, per-half sequencing so only one (TM,KWC) f32 temp is live.
# ----------------------------------------------------------------------------
def _resize_tile_kernel(rblk_ref, cblk_ref,
                        wr_lo_ref, wr_hi_ref, wc_lo_ref, wc_hi_ref,
                        img00_ref, img01_ref, img10_ref, img11_ref,
                        out_ref):
    del rblk_ref, cblk_ref          # consumed by the index_maps only
    # Half 0: row resample over input lane-block cb, then fold through wc_lo.
    t0 = (jnp.dot(wr_lo_ref[...], img00_ref[...], preferred_element_type=jnp.float32)
          + jnp.dot(wr_hi_ref[...], img10_ref[...], preferred_element_type=jnp.float32))
    acc = jnp.dot(t0.astype(jnp.bfloat16), wc_lo_ref[...],
                  preferred_element_type=jnp.float32)
    # Half 1: row resample over input lane-block cb+1, fold through wc_hi.
    t1 = (jnp.dot(wr_lo_ref[...], img01_ref[...], preferred_element_type=jnp.float32)
          + jnp.dot(wr_hi_ref[...], img11_ref[...], preferred_element_type=jnp.float32))
    acc = acc + jnp.dot(t1.astype(jnp.bfloat16), wc_hi_ref[...],
                        preferred_element_type=jnp.float32)
    out_ref[...] = acc.astype(out_ref.dtype)


def resize_image(image_hwc, size, *, tm_target=256, tnc_target=1024,
                 out_dtype=jnp.float32):
    """Pallas equivalent of the Lanczos-4 resize stage (HWC float image in/out)."""
    H, W, C = image_hwc.shape
    aspect_ratio = W / H
    new_W = int(round(size * aspect_ratio))
    new_H = int(size)

    Wrow = lanczos4_weight_matrix(H, new_H)      # (new_H, H) float64
    Wcol = lanczos4_weight_matrix(W, new_W)      # (new_W, W) float64

    out_itemsize = jnp.dtype(out_dtype).itemsize
    vmem_budget, vmem_cap = _vmem_budget_and_cap()
    TM, TNC, KH, KWC, n_i, n_j, est = _choose_tiles(
        Wrow, Wcol, C, tm_target, tnc_target, vmem_budget, out_itemsize)
    new_Hp = n_i * TM
    L = new_W * C
    LP = n_j * TNC

    wr_lo, wr_hi, rblk = _build_row_banded(Wrow, TM, n_i, new_Hp, KH)
    wc_lo, wc_hi, cblk = _build_col_banded(Wcol, TNC, n_j, C, KWC)

    # HWC consumed natively as an (H, W*C) lane-major slab; bf16 halves HBM reads.
    rows_p = _round_up(max(H, (int(rblk.max()) + 2) * KH), KH)
    lanes_p = _round_up(max(W * C, (int(cblk.max()) + 2) * KWC), KWC)
    img2d = jnp.asarray(image_hwc, dtype=jnp.bfloat16).reshape(H, W * C)
    img2d = jnp.pad(img2d, ((0, rows_p - H), (0, lanes_p - W * C)))

    wr_lo_d = jnp.asarray(wr_lo, dtype=jnp.bfloat16)
    wr_hi_d = jnp.asarray(wr_hi, dtype=jnp.bfloat16)
    wc_lo_d = jnp.asarray(wc_lo, dtype=jnp.bfloat16)
    wc_hi_d = jnp.asarray(wc_hi, dtype=jnp.bfloat16)
    rblk_d = jnp.asarray(rblk)                   # int32, scalar-prefetched
    cblk_d = jnp.asarray(cblk)                   # int32, scalar-prefetched

    # Grid order: keep the weight operand with the larger re-fetch cost resident
    # across the inner loop (its block index depends only on the outer axis).
    # Tie-break: larger axis leads so the v7x 2-TC megacore has >=2 tiles to shard.
    total_wr_bytes = 2 * new_Hp * KH * 2
    total_wc_bytes = 2 * (n_j * KWC) * TNC * 2
    red_i_outer = (n_i - 1) * total_wc_bytes if n_j > 1 else 0
    red_j_outer = (n_j - 1) * total_wr_bytes if n_i > 1 else 0
    swap_grid = (red_j_outer < red_i_outer or
                 (red_j_outer == red_i_outer and n_j > n_i))
    if swap_grid:
        grid = (n_j, n_i)
        I = lambda a, b: b
        J = lambda a, b: a
    else:
        grid = (n_i, n_j)
        I = lambda a, b: a
        J = lambda a, b: b

    flops = int(n_i * n_j * (8 * TM * KH * KWC + 4 * TM * KWC * TNC))
    bytes_accessed = int(n_i * n_j * (4 * KH * KWC * 2 + 2 * TM * KH * 2
                                      + 2 * KWC * TNC * 2
                                      + TM * TNC * out_itemsize))
    vmem_limit = int(min(vmem_cap, max(32 * 2 ** 20, est + 8 * 2 ** 20)))

    grid_spec = pltpu.PrefetchScalarGridSpec(
        num_scalar_prefetch=2,                    # rblk, cblk band-offset tables
        grid=grid,
        in_specs=[
            pl.BlockSpec((TM, KH), lambda a, b, rb, cb: (I(a, b), 0)),       # wr_lo
            pl.BlockSpec((TM, KH), lambda a, b, rb, cb: (I(a, b), 0)),       # wr_hi
            pl.BlockSpec((KWC, TNC), lambda a, b, rb, cb: (J(a, b), 0)),     # wc_lo
            pl.BlockSpec((KWC, TNC), lambda a, b, rb, cb: (J(a, b), 0)),     # wc_hi
            # 2x2 aligned image blocks covering this tile's Lanczos band.
            # NOTE: if profiling shows exposed DMA, pipeline_mode=pl.Buffered(3)
            # on these four specs is the next knob (footprint allows it on v5e/v6e).
            pl.BlockSpec((KH, KWC), lambda a, b, rb, cb: (rb[I(a, b)], cb[J(a, b)])),
            pl.BlockSpec((KH, KWC), lambda a, b, rb, cb: (rb[I(a, b)], cb[J(a, b)] + 1)),
            pl.BlockSpec((KH, KWC), lambda a, b, rb, cb: (rb[I(a, b)] + 1, cb[J(a, b)])),
            pl.BlockSpec((KH, KWC), lambda a, b, rb, cb: (rb[I(a, b)] + 1, cb[J(a, b)] + 1)),
        ],
        out_specs=pl.BlockSpec((TM, TNC), lambda a, b, rb, cb: (I(a, b), J(a, b))),
    )

    out_flat = pl.pallas_call(
        _resize_tile_kernel,
        out_shape=jax.ShapeDtypeStruct((new_Hp, LP), out_dtype),
        grid_spec=grid_spec,
        compiler_params=pltpu.CompilerParams(
            dimension_semantics=("parallel", "parallel"),
            vmem_limit_bytes=vmem_limit,
        ),
        cost_estimate=pl.CostEstimate(
            flops=flops, transcendentals=0, bytes_accessed=bytes_accessed),
    )(rblk_d, cblk_d, wr_lo_d, wr_hi_d, wc_lo_d, wc_hi_d,
      img2d, img2d, img2d, img2d)

    # Output is already channel-interleaved HWC; just drop lane/row padding.
    return out_flat[:new_H, :L].reshape(new_H, new_W, C)


# ----------------------------------------------------------------------------
# Demo / self-check
# ----------------------------------------------------------------------------
def _dense_reference(image_hwc, Wrow, Wcol):
    H, W, C = image_hwc.shape
    img = np.asarray(image_hwc, dtype=np.float64)
    tmp = (Wrow @ img.reshape(H, W * C)).reshape(Wrow.shape[0], W, C)
    return np.einsum('nwc,mw->nmc', tmp, Wcol, optimize=True)


if __name__ == "__main__":
    key = jax.random.PRNGKey(0)

    # Small demo shape (single-tile path), f32 output.
    H, W, C = 16, 24, 3
    size = 8
    image = jax.random.uniform(key, (H, W, C), dtype=jnp.float32)
    resized = jax.block_until_ready(resize_image(image, size))

    new_W = int(round(size * (W / H)))
    assert resized.shape == (size, new_W, C), resized.shape
    assert resized.dtype == jnp.float32
    assert bool(jnp.all(jnp.isfinite(resized)))
    ref = _dense_reference(image, lanczos4_weight_matrix(H, size),
                           lanczos4_weight_matrix(W, new_W))
    err = float(np.max(np.abs(np.asarray(resized, dtype=np.float64) - ref)))
    assert err < 0.08, f"max abs error vs dense reference: {err}"

    # Second shape exercising the multi-tile / banded path (nonzero row-block
    # offsets, multi-row-tile grid) via smaller tile targets, bf16 output path.
    H2, W2, C2 = 128, 128, 3
    size2 = 64
    image2 = jax.random.uniform(jax.random.fold_in(key, 1), (H2, W2, C2),
                                dtype=jnp.float32)
    resized2 = jax.block_until_ready(
        resize_image(image2, size2, tm_target=16, tnc_target=128,
                     out_dtype=jnp.bfloat16))
    new_W2 = int(round(size2 * (W2 / H2)))
    assert resized2.shape == (size2, new_W2, C2), resized2.shape
    assert bool(jnp.all(jnp.isfinite(resized2.astype(jnp.float32))))
    ref2 = _dense_reference(image2, lanczos4_weight_matrix(H2, size2),
                            lanczos4_weight_matrix(W2, new_W2))
    err2 = float(np.max(np.abs(
        np.asarray(resized2.astype(jnp.float32), dtype=np.float64) - ref2)))
    assert err2 < 0.08, f"max abs error vs dense reference (tiled): {err2}"

    print("KERNEL_OK")
</pallas_src>

<mosaic_0001>
module attributes {stable_mosaic.version = 11 : i64} {
  func.func @_resize_tile_kernel(%arg0: i32, %arg1: i32, %arg2: memref<1xi32, #tpu.memory_space<smem>>, %arg3: memref<1xi32, #tpu.memory_space<smem>>, %arg4: memref<16x16xbf16, #tpu.memory_space<vmem>>, %arg5: memref<16x16xbf16, #tpu.memory_space<vmem>>, %arg6: memref<256x256xbf16, #tpu.memory_space<vmem>>, %arg7: memref<256x256xbf16, #tpu.memory_space<vmem>>, %arg8: memref<16x256xbf16, #tpu.memory_space<vmem>>, %arg9: memref<16x256xbf16, #tpu.memory_space<vmem>>, %arg10: memref<16x256xbf16, #tpu.memory_space<vmem>>, %arg11: memref<16x256xbf16, #tpu.memory_space<vmem>>, %arg12: memref<16x256xf32, #tpu.memory_space<vmem>>) attributes {dimension_semantics = [#tpu.dimension_semantics<parallel>, #tpu.dimension_semantics<parallel>], iteration_bounds = array<i64: 1, 1>, scalar_prefetch = 2 : i64, scratch_operands = 0 : i64, tpu.core_type = #tpu.core_type<tc>, window_params = [{transform_indices = @transform_0, window_bounds = array<i64: 16, 16>}, {transform_indices = @transform_1, window_bounds = array<i64: 16, 16>}, {transform_indices = @transform_2, window_bounds = array<i64: 256, 256>}, {transform_indices = @transform_3, window_bounds = array<i64: 256, 256>}, {transform_indices = @transform_4, window_bounds = array<i64: 16, 256>}, {transform_indices = @transform_5, window_bounds = array<i64: 16, 256>}, {transform_indices = @transform_6, window_bounds = array<i64: 16, 256>}, {transform_indices = @transform_7, window_bounds = array<i64: 16, 256>}, {transform_indices = @transform_8, window_bounds = array<i64: 16, 256>}]} {
    %c0 = arith.constant 0 : index
    %c0_0 = arith.constant 0 : index
    %0 = vector.load %arg4[%c0, %c0_0] : memref<16x16xbf16, #tpu.memory_space<vmem>>, vector<16x16xbf16>
    %c0_1 = arith.constant 0 : index
    %c0_2 = arith.constant 0 : index
    %1 = vector.load %arg8[%c0_1, %c0_2] : memref<16x256xbf16, #tpu.memory_space<vmem>>, vector<16x256xbf16>
    %cst = arith.constant dense<0.000000e+00> : vector<16x256xf32>
    %2 = tpu.matmul %0, %1, %cst {dimension_numbers = #tpu.dot_dimension_numbers<[1], [0], [0], [1], [0, 0, 1, 1], [], []>} : vector<16x16xbf16>, vector<16x256xbf16>, vector<16x256xf32> -> vector<16x256xf32>
    %c0_3 = arith.constant 0 : index
    %c0_4 = arith.constant 0 : index
    %3 = vector.load %arg5[%c0_3, %c0_4] : memref<16x16xbf16, #tpu.memory_space<vmem>>, vector<16x16xbf16>
    %c0_5 = arith.constant 0 : index
    %c0_6 = arith.constant 0 : index
    %4 = vector.load %arg10[%c0_5, %c0_6] : memref<16x256xbf16, #tpu.memory_space<vmem>>, vector<16x256xbf16>
    %cst_7 = arith.constant dense<0.000000e+00> : vector<16x256xf32>
    %5 = tpu.matmul %3, %4, %cst_7 {dimension_numbers = #tpu.dot_dimension_numbers<[1], [0], [0], [1], [0, 0, 1, 1], [], []>} : vector<16x16xbf16>, vector<16x256xbf16>, vector<16x256xf32> -> vector<16x256xf32>
    %6 = arith.addf %2, %5 : vector<16x256xf32>
    %7 = arith.truncf %6 : vector<16x256xf32> to vector<16x256xbf16>
    %c0_8 = arith.constant 0 : index
    %c0_9 = arith.constant 0 : index
    %8 = vector.load %arg6[%c0_8, %c0_9] : memref<256x256xbf16, #tpu.memory_space<vmem>>, vector<256x256xbf16>
    %cst_10 = arith.constant dense<0.000000e+00> : vector<16x256xf32>
    %9 = tpu.matmul %7, %8, %cst_10 {dimension_numbers = #tpu.dot_dimension_numbers<[1], [0], [0], [1], [0, 0, 1, 1], [], []>} : vector<16x256xbf16>, vector<256x256xbf16>, vector<16x256xf32> -> vector<16x256xf32>
    %c0_11 = arith.constant 0 : index
    %c0_12 = arith.constant 0 : index
    %10 = vector.load %arg4[%c0_11, %c0_12] : memref<16x16xbf16, #tpu.memory_space<vmem>>, vector<16x16xbf16>
    %c0_13 = arith.constant 0 : index
    %c0_14 = arith.constant 0 : index
    %11 = vector.load %arg9[%c0_13, %c0_14] : memref<16x256xbf16, #tpu.memory_space<vmem>>, vector<16x256xbf16>
    %cst_15 = arith.constant dense<0.000000e+00> : vector<16x256xf32>
    %12 = tpu.matmul %10, %11, %cst_15 {dimension_numbers = #tpu.dot_dimension_numbers<[1], [0], [0], [1], [0, 0, 1, 1], [], []>} : vector<16x16xbf16>, vector<16x256xbf16>, vector<16x256xf32> -> vector<16x256xf32>
    %c0_16 = arith.constant 0 : index
    %c0_17 = arith.constant 0 : index
    %13 = vector.load %arg5[%c0_16, %c0_17] : memref<16x16xbf16, #tpu.memory_space<vmem>>, vector<16x16xbf16>
    %c0_18 = arith.constant 0 : index
    %c0_19 = arith.constant 0 : index
    %14 = vector.load %arg11[%c0_18, %c0_19] : memref<16x256xbf16, #tpu.memory_space<vmem>>, vector<16x256xbf16>
    %cst_20 = arith.constant dense<0.000000e+00> : vector<16x256xf32>
    %15 = tpu.matmul %13, %14, %cst_20 {dimension_numbers = #tpu.dot_dimension_numbers<[1], [0], [0], [1], [0, 0, 1, 1], [], []>} : vector<16x16xbf16>, vector<16x256xbf16>, vector<16x256xf32> -> vector<16x256xf32>
    %16 = arith.addf %12, %15 : vector<16x256xf32>
    %17 = arith.truncf %16 : vector<16x256xf32> to vector<16x256xbf16>
    %c0_21 = arith.constant 0 : index
    %c0_22 = arith.constant 0 : index
    %18 = vector.load %arg7[%c0_21, %c0_22] : memref<256x256xbf16, #tpu.memory_space<vmem>>, vector<256x256xbf16>
    %cst_23 = arith.constant dense<0.000000e+00> : vector<16x256xf32>
    %19 = tpu.matmul %17, %18, %cst_23 {dimension_numbers = #tpu.dot_dimension_numbers<[1], [0], [0], [1], [0, 0, 1, 1], [], []>} : vector<16x256xbf16>, vector<256x256xbf16>, vector<16x256xf32> -> vector<16x256xf32>
    %20 = arith.addf %9, %19 : vector<16x256xf32>
    %c0_24 = arith.constant 0 : index
    %c0_25 = arith.constant 0 : index
    %21 = vector.load %arg12[%c0_24, %c0_25] : memref<16x256xf32, #tpu.memory_space<vmem>>, vector<16x256xf32>
    tpu.vector_store %arg12[%c0_24, %c0_25], %20 {strides = array<i32>} : memref<16x256xf32, #tpu.memory_space<vmem>>, vector<16x256xf32>,
    return
  }
  func.func @transform_0(%arg0: i32, %arg1: i32, %arg2: memref<1xi32, #tpu.memory_space<smem>>, %arg3: memref<1xi32, #tpu.memory_space<smem>>) -> (i32, i32) {
    %c0_i32 = arith.constant 0 : i32
    %c0_i32_0 = arith.constant 0 : i32
    return %arg0, %c0_i32 : i32, i32
  }
  func.func @transform_1(%arg0: i32, %arg1: i32, %arg2: memref<1xi32, #tpu.memory_space<smem>>, %arg3: memref<1xi32, #tpu.memory_space<smem>>) -> (i32, i32) {
    %c0_i32 = arith.constant 0 : i32
    %c0_i32_0 = arith.constant 0 : i32
    return %arg0, %c0_i32 : i32, i32
  }
  func.func @transform_2(%arg0: i32, %arg1: i32, %arg2: memref<1xi32, #tpu.memory_space<smem>>, %arg3: memref<1xi32, #tpu.memory_space<smem>>) -> (i32, i32) {
    %c0_i32 = arith.constant 0 : i32
    %c0_i32_0 = arith.constant 0 : i32
    return %arg1, %c0_i32 : i32, i32
  }
  func.func @transform_3(%arg0: i32, %arg1: i32, %arg2: memref<1xi32, #tpu.memory_space<smem>>, %arg3: memref<1xi32, #tpu.memory_space<smem>>) -> (i32, i32) {
    %c0_i32 = arith.constant 0 : i32
    %c0_i32_0 = arith.constant 0 : i32
    return %arg1, %c0_i32 : i32, i32
  }
  func.func @transform_4(%arg0: i32, %arg1: i32, %arg2: memref<1xi32, #tpu.memory_space<smem>>, %arg3: memref<1xi32, #tpu.memory_space<smem>>) -> (i32, i32) {
    %0 = arith.index_cast %arg0 : i32 to index
    %1 = memref.load %arg2[%0] : memref<1xi32, #tpu.memory_space<smem>>
    %2 = arith.index_cast %arg1 : i32 to index
    %3 = memref.load %arg3[%2] : memref<1xi32, #tpu.memory_space<smem>>
    %c0_i32 = arith.constant 0 : i32
    return %1, %3 : i32, i32
  }
  func.func @transform_5(%arg0: i32, %arg1: i32, %arg2: memref<1xi32, #tpu.memory_space<smem>>, %arg3: memref<1xi32, #tpu.memory_space<smem>>) -> (i32, i32) {
    %0 = arith.index_cast %arg0 : i32 to index
    %1 = memref.load %arg2[%0] : memref<1xi32, #tpu.memory_space<smem>>
    %2 = arith.index_cast %arg1 : i32 to index
    %3 = memref.load %arg3[%2] : memref<1xi32, #tpu.memory_space<smem>>
    %c1_i32 = arith.constant 1 : i32
    %4 = arith.addi %3, %c1_i32 : i32
    %c0_i32 = arith.constant 0 : i32
    return %1, %4 : i32, i32
  }
  func.func @transform_6(%arg0: i32, %arg1: i32, %arg2: memref<1xi32, #tpu.memory_space<smem>>, %arg3: memref<1xi32, #tpu.memory_space<smem>>) -> (i32, i32) {
    %0 = arith.index_cast %arg0 : i32 to index
    %1 = memref.load %arg2[%0] : memref<1xi32, #tpu.memory_space<smem>>
    %c1_i32 = arith.constant 1 : i32
    %2 = arith.addi %1, %c1_i32 : i32
    %3 = arith.index_cast %arg1 : i32 to index
    %4 = memref.load %arg3[%3] : memref<1xi32, #tpu.memory_space<smem>>
    %c0_i32 = arith.constant 0 : i32
    return %2, %4 : i32, i32
  }
  func.func @transform_7(%arg0: i32, %arg1: i32, %arg2: memref<1xi32, #tpu.memory_space<smem>>, %arg3: memref<1xi32, #tpu.memory_space<smem>>) -> (i32, i32) {
    %0 = arith.index_cast %arg0 : i32 to index
    %1 = memref.load %arg2[%0] : memref<1xi32, #tpu.memory_space<smem>>
    %c1_i32 = arith.constant 1 : i32
    %2 = arith.addi %1, %c1_i32 : i32
    %3 = arith.index_cast %arg1 : i32 to index
    %4 = memref.load %arg3[%3] : memref<1xi32, #tpu.memory_space<smem>>
    %c1_i32_0 = arith.constant 1 : i32
    %5 = arith.addi %4, %c1_i32_0 : i32
    %c0_i32 = arith.constant 0 : i32
    return %2, %5 : i32, i32
  }
  func.func @transform_8(%arg0: i32, %arg1: i32, %arg2: memref<1xi32, #tpu.memory_space<smem>>, %arg3: memref<1xi32, #tpu.memory_space<smem>>) -> (i32, i32) {
    %c0_i32 = arith.constant 0 : i32
    return %arg0, %arg1 : i32, i32
  }
}

</mosaic_0001>

<llo_original>
// kernel: tpu_custom_call.1
$region0: #{tpu_custom_call.1}
  #allocation0 [shape = 'u32[]', space=smem, size = 0x4, offset = 0x4, fixed_abs, tag = 'smem constant byte address 0x4 - core index']
  #allocation1 [shape = 'u32[144,128]{1,0:T(1,128)}', space=vmem, size = 0x12000, scoped, tag = 'internal scratch']
  #allocation2 [shape = 's32[1]{0}', space=sflag, size = 0x4, scoped, tag = 'scoped memory for tpu_custom_call.1']
  #allocation3 [shape = 's32[1]{0:T(128)S(6)}', space=smem, size = 0x200, scoped, tag = 'prefetched SMEM operand 0']
  #allocation4 [shape = 's32[1]{0:T(128)S(6)}', space=smem, size = 0x200, scoped, tag = 'prefetched SMEM operand 1']
  %s0 = inlined_call_operand.<no memory space> [shape: s32[1], index: 0, kind: input, shape index: {}]
  %s1 = inlined_call_operand.<no memory space> [shape: s32[1], index: 1, kind: input, shape index: {}]
  %s2 = inlined_call_operand.hbm [shape: bf16[16,16], index: 2, kind: input, shape index: {}]
  %s3 = inlined_call_operand.vmem [shape: bf16[16,16], index: 3, kind: input, shape index: {}]
  %s4 = inlined_call_operand.hbm [shape: bf16[256,256], index: 4, kind: input, shape index: {}]
  %s5 = inlined_call_operand.hbm [shape: bf16[256,256], index: 5, kind: input, shape index: {}]
  %s6 = inlined_call_operand.hbm [shape: bf16[32,512], index: 6, kind: input, shape index: {}]
  %s7 = inlined_call_operand.hbm [shape: bf16[32,512], index: 7, kind: input, shape index: {}]
  %s8 = inlined_call_operand.hbm [shape: bf16[32,512], index: 8, kind: input, shape index: {}]
  %s9 = inlined_call_operand.hbm [shape: bf16[32,512], index: 9, kind: input, shape index: {}]
  %s10 = inlined_call_operand.hbm [shape: f32[16,256], index: 10, kind: output, shape index: {}]
  %s11 = sld [smem:[#allocation0]]
  $region70: #{tpu_custom_call.1} parent=0
    _
  %s13 = ssub.s32 1, %s11
  %s14 = scalar_select 0, %s13, %s11
  %15 = sst [smem:[#allocation3]] %s0
  %16 = sst [smem:[#allocation4]] %s1
  $region1: #{tpu_custom_call.1} parent=0
    #allocation5 [shape = 'u8[4096]{0}', space=vmem, size = 0x1000, scoped, tag = 'input window, operand 2, single buffered']
    #allocation6 [shape = 's32[1]{0}', space=sflag, size = 0x4, scoped, tag = 'scoped memory for tpu_custom_call.1']
    #allocation7 [shape = 's32[1]{0}', space=sflag, size = 0x4, scoped, tag = 'scoped memory for tpu_custom_call.1']
    #allocation8 [shape = 'u8[131072]{0}', space=vmem, size = 0x20000, scoped, tag = 'input window, operand 4, single buffered']
    #allocation9 [shape = 's32[1]{0}', space=sflag, size = 0x4, scoped, tag = 'scoped memory for tpu_custom_call.1']
    #allocation10 [shape = 'u8[131072]{0}', space=vmem, size = 0x20000, scoped, tag = 'input window, operand 5, single buffered']
    #allocation11 [shape = 'u8[8192]{0}', space=vmem, size = 0x2000, scoped, tag = 'input window, operand 6, single buffered']
    #allocation12 [shape = 's32[1]{0}', space=sflag, size = 0x4, scoped, tag = 'scoped memory for tpu_custom_call.1']
    #allocation13 [shape = 'u8[8192]{0}', space=vmem, size = 0x2000, scoped, tag = 'input window, operand 7, single buffered']
    #allocation14 [shape = 'u8[8192]{0}', space=vmem, size = 0x2000, scoped, tag = 'input window, operand 8, single buffered']
    #allocation15 [shape = 's32[1]{0}', space=sflag, size = 0x4, scoped, tag = 'scoped memory for tpu_custom_call.1']
    #allocation16 [shape = 'u8[8192]{0}', space=vmem, size = 0x2000, scoped, tag = 'input window, operand 9, single buffered']
    #allocation17 [shape = 'u8[16384]{0}', space=vmem, size = 0x4000, scoped, tag = 'output window, operand 0, single buffered']
    %17 = vsyncpa [#allocation6], 0
    %18 = vsyncpa [#allocation9], 0
    %19 = vsyncpa [#allocation12], 0
    %20 = vsyncpa [#allocation15], 0
    %21 = vsyncpa [#allocation7], 0
    // Predicated region
    $region2: #{tpu_custom_call.1} parent=1 // pred_check
      _
    $region3: #{tpu_custom_call.1} parent=1 // pred_check_branch
      %23 = sbr.rel (0) target = $region5
    $region4: #{tpu_custom_call.1} parent=1 // pred_region
      %s25 = ssub.s32 128, 128
      %26 = vsyncadd [#allocation6], %s25
      %s27 = sshll.u32 [#allocation5], 4
      %s28 = int_to_ptr.vmem [resolvable:$true] %s27
      %33 = dma.hbm_to_vmem [thread:$0]  %s2, 128, %s28, [#allocation6], 64, 64, 4
    $region5: #{tpu_custom_call.1} parent=1 // pred_fallthru
      _
    // Predicated region
    $region6: #{tpu_custom_call.1} parent=1 // pred_check
      _
    $region7: #{tpu_custom_call.1} parent=1 // pred_check_branch
      %35 = sbr.rel (0) target = $region9
    $region8: #{tpu_custom_call.1} parent=1 // pred_region
      _
    $region9: #{tpu_custom_call.1} parent=1 // pred_fallthru
      _
    // Predicated region
    $region10: #{tpu_custom_call.1} parent=1 // pred_check
      _
    $region11: #{tpu_custom_call.1} parent=1 // pred_check_branch
      %37 = sbr.rel (0) target = $region13
    $region12: #{tpu_custom_call.1} parent=1 // pred_region
      %s39 = ssub.s32 4096, 4096
      %40 = vsyncadd [#allocation9], %s39
      %s41 = sshll.u32 [#allocation8], 4
      %s42 = int_to_ptr.vmem [resolvable:$true] %s41
      %47 = dma.hbm_to_vmem [thread:$0]  %s4, 4096, %s42, [#allocation9], 128, 128, 8
    $region13: #{tpu_custom_call.1} parent=1 // pred_fallthru
      _
    // Predicated region
    $region14: #{tpu_custom_call.1} parent=1 // pred_check
      _
    $region15: #{tpu_custom_call.1} parent=1 // pred_check_branch
      %49 = sbr.rel (0) target = $region17
    $region16: #{tpu_custom_call.1} parent=1 // pred_region
      %s51 = ssub.s32 4096, 4096
      %52 = vsyncadd [#allocation9], %s51
      %s53 = sshll.u32 [#allocation10], 4
      %s54 = int_to_ptr.vmem [resolvable:$true] %s53
      %59 = dma.hbm_to_vmem [thread:$0]  %s5, 4096, %s54, [#allocation9], 128, 128, 8
    $region17: #{tpu_custom_call.1} parent=1 // pred_fallthru
      _
    // Predicated region
    $region18: #{tpu_custom_call.1} parent=1 // pred_check
      _
    $region19: #{tpu_custom_call.1} parent=1 // pred_check_branch
      %61 = sbr.rel (0) target = $region21
    $region20: #{tpu_custom_call.1} parent=1 // pred_region
      %s62 = sld [smem:[#allocation3]]
      %s63 = sld [smem:[#allocation4]]
      %s64 = smul.u32 2, %s62
      %s65 = smul.u32 2, %s63
      %s67 = ssub.s32 256, 256
      %68 = vsyncadd [#allocation12], %s67
      %s69 = smul.addr %s64, 4
      %s70 = sadd.s32 %s65, %s69
      %s71 = smul.addr %s70, 64
      %s72 = scalar_lea.hbm %s6, %s71
      %s73 = sshll.u32 [#allocation11], 4
      %s74 = int_to_ptr.vmem [resolvable:$true] %s73
      %79 = dma.hbm_to_vmem [thread:$0]  %s72, 256, %s74, [#allocation12], 256, 128, 8
    $region21: #{tpu_custom_call.1} parent=1 // pred_fallthru
      _
    // Predicated region
    $region22: #{tpu_custom_call.1} parent=1 // pred_check
      _
    $region23: #{tpu_custom_call.1} parent=1 // pred_check_branch
      %81 = sbr.rel (0) target = $region25
    $region24: #{tpu_custom_call.1} parent=1 // pred_region
      %s82 = sld [smem:[#allocation3]]
      %s83 = sld [smem:[#allocation4]]
      %s84 = sadd.s32 %s83, 1
      %s85 = smul.u32 2, %s82
      %s86 = smul.u32 2, %s84
      %s88 = ssub.s32 256, 256
      %89 = vsyncadd [#allocation12], %s88
      %s90 = smul.addr %s85, 4
      %s91 = sadd.s32 %s86, %s90
      %s92 = smul.addr %s91, 64
      %s93 = scalar_lea.hbm %s7, %s92
      %s94 = sshll.u32 [#allocation13], 4
      %s95 = int_to_ptr.vmem [resolvable:$true] %s94
      %100 = dma.hbm_to_vmem [thread:$0]  %s93, 256, %s95, [#allocation12], 256, 128, 8
    $region25: #{tpu_custom_call.1} parent=1 // pred_fallthru
      _
    // Predicated region
    $region26: #{tpu_custom_call.1} parent=1 // pred_check
      _
    $region27: #{tpu_custom_call.1} parent=1 // pred_check_branch
      %102 = sbr.rel (0) target = $region29
    $region28: #{tpu_custom_call.1} parent=1 // pred_region
      %s103 = sld [smem:[#allocation3]]
      %s104 = sadd.s32 %s103, 1
      %s105 = sld [smem:[#allocation4]]
      %s106 = smul.u32 2, %s104
      %s107 = smul.u32 2, %s105
      %s109 = ssub.s32 256, 256
      %110 = vsyncadd [#allocation15], %s109
      %s111 = smul.addr %s106, 4
      %s112 = sadd.s32 %s107, %s111
      %s113 = smul.addr %s112, 64
      %s114 = scalar_lea.hbm %s8, %s113
      %s115 = sshll.u32 [#allocation14], 4
      %s116 = int_to_ptr.vmem [resolvable:$true] %s115
      %121 = dma.hbm_to_vmem [thread:$0]  %s114, 256, %s116, [#allocation15], 256, 128, 8
    $region29: #{tpu_custom_call.1} parent=1 // pred_fallthru
      _
    // Predicated region
    $region30: #{tpu_custom_call.1} parent=1 // pred_check
      _
    $region31: #{tpu_custom_call.1} parent=1 // pred_check_branch
      %123 = sbr.rel (0) target = $region33
    $region32: #{tpu_custom_call.1} parent=1 // pred_region
      %s124 = sld [smem:[#allocation3]]
      %s125 = sadd.s32 %s124, 1
      %s126 = sld [smem:[#allocation4]]
      %s127 = sadd.s32 %s126, 1
      %s128 = smul.u32 2, %s125
      %s129 = smul.u32 2, %s127
      %s131 = ssub.s32 256, 256
      %132 = vsyncadd [#allocation15], %s131
      %s133 = smul.addr %s128, 4
      %s134 = sadd.s32 %s129, %s133
      %s135 = smul.addr %s134, 64
      %s136 = scalar_lea.hbm %s9, %s135
      %s137 = sshll.u32 [#allocation16], 4
      %s138 = int_to_ptr.vmem [resolvable:$true] %s137
      %143 = dma.hbm_to_vmem [thread:$0]  %s136, 256, %s138, [#allocation15], 256, 128, 8
    $region33: #{tpu_custom_call.1} parent=1 // pred_fallthru
      _
    // Predicated region
    $region34: #{tpu_custom_call.1} parent=1 // pred_check
      _
    $region35: #{tpu_custom_call.1} parent=1 // pred_check_branch
      %145 = sbr.rel (0) target = $region37
    $region36: #{tpu_custom_call.1} parent=1 // pred_region
      %146 = dma.done [#allocation6], 128
    $region37: #{tpu_custom_call.1} parent=1 // pred_fallthru
      _
    // Predicated region
    $region38: #{tpu_custom_call.1} parent=1 // pred_check
      _
    $region39: #{tpu_custom_call.1} parent=1 // pred_check_branch
      %148 = sbr.rel (0) target = $region41
    $region40: #{tpu_custom_call.1} parent=1 // pred_region
      %149 = dma.done [#allocation9], 4096
    $region41: #{tpu_custom_call.1} parent=1 // pred_fallthru
      _
    // Predicated region
    $region42: #{tpu_custom_call.1} parent=1 // pred_check
      _
    $region43: #{tpu_custom_call.1} parent=1 // pred_check_branch
      %151 = sbr.rel (0) target = $region45
    $region44: #{tpu_custom_call.1} parent=1 // pred_region
      %152 = dma.done [#allocation9], 4096
    $region45: #{tpu_custom_call.1} parent=1 // pred_fallthru
      _
    // Predicated region
    $region46: #{tpu_custom_call.1} parent=1 // pred_check
      _
    $region47: #{tpu_custom_call.1} parent=1 // pred_check_branch
      %154 = sbr.rel (0) target = $region49
    $region48: #{tpu_custom_call.1} parent=1 // pred_region
      %155 = dma.done [#allocation12], 256
    $region49: #{tpu_custom_call.1} parent=1 // pred_fallthru
      _
    // Predicated region
    $region50: #{tpu_custom_call.1} parent=1 // pred_check
      _
    $region51: #{tpu_custom_call.1} parent=1 // pred_check_branch
      %157 = sbr.rel (0) target = $region53
    $region52: #{tpu_custom_call.1} parent=1 // pred_region
      %158 = dma.done [#allocation12], 256
    $region53: #{tpu_custom_call.1} parent=1 // pred_fallthru
      _
    // Predicated region
    $region54: #{tpu_custom_call.1} parent=1 // pred_check
      _
    $region55: #{tpu_custom_call.1} parent=1 // pred_check_branch
      %160 = sbr.rel (0) target = $region57
    $region56: #{tpu_custom_call.1} parent=1 // pred_region
      %161 = dma.done [#allocation15], 256
    $region57: #{tpu_custom_call.1} parent=1 // pred_fallthru
      _
    // Predicated region
    $region58: #{tpu_custom_call.1} parent=1 // pred_check
      _
    $region59: #{tpu_custom_call.1} parent=1 // pred_check_branch
      %163 = sbr.rel (0) target = $region61
    $region60: #{tpu_custom_call.1} parent=1 // pred_region
      %164 = dma.done [#allocation15], 256
    $region61: #{tpu_custom_call.1} parent=1 // pred_fallthru
      _
    %s165 = sld [smem:[#allocation3]]
    %s166 = sld [smem:[#allocation4]]
    %s167 = smul.u32 2, %s165
    %s168 = smul.u32 2, %s166
    %s169 = sld [smem:[#allocation3]]
    %s170 = sld [smem:[#allocation4]]
    %s171 = sadd.s32 %s170, 1
    %s172 = smul.u32 2, %s169
    %s173 = smul.u32 2, %s171
    %s174 = sld [smem:[#allocation3]]
    %s175 = sadd.s32 %s174, 1
    %s176 = sld [smem:[#allocation4]]
    %s177 = smul.u32 2, %s175
    %s178 = smul.u32 2, %s176
    %s179 = sld [smem:[#allocation3]]
    %s180 = sadd.s32 %s179, 1
    %s181 = sld [smem:[#allocation4]]
    %s182 = sadd.s32 %s181, 1
    %s183 = smul.u32 2, %s180
    %s184 = smul.u32 2, %s182
    %v186 = vld [vmem:[#allocation5] sm:$0xf]
    %v187 = vld [vmem:[#allocation5 + $0x4] sm:$0xf]
    %v188 = vld [vmem:[#allocation11] sm:$0xff]
    %v189 = vld [vmem:[#allocation11 + $0x8] sm:$0xff]
    %v190 = vld [vmem:[%s3] sm:$0xf]
    %v191 = vld [vmem:[%s3 + $0x4] sm:$0xf]
    %v192 = vld [vmem:[#allocation14] sm:$0xff]
    %v193 = vld [vmem:[#allocation14 + $0x8] sm:$0xff]
    %v196 = vunpack.c.l.b16 %v190
    %v197 = vunpack.c.l.b16 %v191
    %v198 = vpack.c.b16 %v197, %v196
    %v201 = vunpack.c.l.b16 %v192
    %v202 = vunpack.c.h.b16 %v192
    %v203 = vunpack.c.l.b16 %v193
    %v204 = vunpack.c.h.b16 %v193
    %v205 = vpack.c.b16 %v203, %v201
    %v206 = vpack.c.b16 %v204, %v202
    %vm209 = vcmask 130048
    %v211 = vsel %vm209, %v198, 0
    %213 = vmatprep.subr.bf16.mxu0 %v206
    %214 = vmatpush1.bf16.msra.mxu0 %v205
    %215 = vmatprep.subr.bf16.mxu0 0
    %216 = vmatpush1.bf16.msra.mxu0 0
    %217 = vmatprep.subr.bf16.mxu0 0
    %218 = vmatpush1.bf16.msra.mxu0 0
    %219 = vmatprep.subr.bf16.mxu0 0
    %220 = vmatpush1.bf16.msra.mxu0 0
    %221 = vmatprep.subr.bf16.mxu0 0
    %222 = vmatpush1.bf16.msra.mxu0 0
    %223 = vmatprep.subr.bf16.mxu0 0
    %224 = vmatpush1.bf16.msra.mxu0 0
    %225 = vmatprep.subr.bf16.mxu0 0
    %226 = vmatpush1.bf16.msra.mxu0 0
    %227 = vmatprep.subr.bf16.mxu0 0
    %228 = vmatpush1.bf16.msra.mxu0 0
    %229 = vmatprep.subr.bf16.mxu0 0
    %230 = vmatpush1.bf16.msra.mxu0 0
    %231 = vmatprep.subr.bf16.mxu0 0
    %232 = vmatpush1.bf16.msra.mxu0 0
    %233 = vmatprep.subr.bf16.mxu0 0
    %234 = vmatpush1.bf16.msra.mxu0 0
    %235 = vmatprep.subr.bf16.mxu0 0
    %236 = vmatpush1.bf16.msra.mxu0 0
    %237 = vmatprep.subr.bf16.mxu0 0
    %238 = vmatpush1.bf16.msra.mxu0 0
    %239 = vmatprep.subr.bf16.mxu0 0
    %240 = vmatpush1.bf16.msra.mxu0 0
    %241 = vmatprep.subr.bf16.mxu0 0
    %242 = vmatpush1.bf16.msra.mxu0 0
    %243 = vmatprep.subr.bf16.mxu0 0
    %244 = vmatpush1.bf16.msra.mxu0 0
    %245 = vmatprep.mubr.bf16.mxu0 0
    %246 = vmatmul.mubr.bf16.gmra.mrb[0].mxu0 %v211
    %v247 = vpop.f32.mrb[0].mxu0
    %v248 = vadd.f32 0.0, %v247
    %v249 = vpop.f32.mrb[0].mxu0
    %v250 = vadd.f32 0.0, %v249
    %v251 = vpop.f32.mrb[0].mxu0
    %v252 = vadd.f32 0.0, %v251
    %v253 = vpop.f32.mrb[0].mxu0
    %v254 = vadd.f32 0.0, %v253
    %255 = vdwg.mxu0
    %v258 = vunpack.c.l.b16 %v186
    %v259 = vunpack.c.l.b16 %v187
    %v260 = vpack.c.b16 %v259, %v258
    %v263 = vunpack.c.l.b16 %v188
    %v264 = vunpack.c.h.b16 %v188
    %v265 = vunpack.c.l.b16 %v189
    %v266 = vunpack.c.h.b16 %v189
    %v267 = vpack.c.b16 %v265, %v263
    %v268 = vpack.c.b16 %v266, %v264
    %v272 = vsel %vm209, %v260, 0
    %274 = vmatprep.subr.bf16.mxu0 %v268
    %275 = vmatpush1.bf16.msra.mxu0 %v267
    %276 = vmatprep.subr.bf16.mxu0 0
    %277 = vmatpush1.bf16.msra.mxu0 0
    %278 = vmatprep.subr.bf16.mxu0 0
    %279 = vmatpush1.bf16.msra.mxu0 0
    %280 = vmatprep.subr.bf16.mxu0 0
    %281 = vmatpush1.bf16.msra.mxu0 0
    %282 = vmatprep.subr.bf16.mxu0 0
    %283 = vmatpush1.bf16.msra.mxu0 0
    %284 = vmatprep.subr.bf16.mxu0 0
    %285 = vmatpush1.bf16.msra.mxu0 0
    %286 = vmatprep.subr.bf16.mxu0 0
    %287 = vmatpush1.bf16.msra.mxu0 0
    %288 = vmatprep.subr.bf16.mxu0 0
    %289 = vmatpush1.bf16.msra.mxu0 0
    %290 = vmatprep.subr.bf16.mxu0 0
    %291 = vmatpush1.bf16.msra.mxu0 0
    %292 = vmatprep.subr.bf16.mxu0 0
    %293 = vmatpush1.bf16.msra.mxu0 0
    %294 = vmatprep.subr.bf16.mxu0 0
    %295 = vmatpush1.bf16.msra.mxu0 0
    %296 = vmatprep.subr.bf16.mxu0 0
    %297 = vmatpush1.bf16.msra.mxu0 0
    %298 = vmatprep.subr.bf16.mxu0 0
    %299 = vmatpush1.bf16.msra.mxu0 0
    %300 = vmatprep.subr.bf16.mxu0 0
    %301 = vmatpush1.bf16.msra.mxu0 0
    %302 = vmatprep.subr.bf16.mxu0 0
    %303 = vmatpush1.bf16.msra.mxu0 0
    %304 = vmatprep.subr.bf16.mxu0 0
    %305 = vmatpush1.bf16.msra.mxu0 0
    %306 = vmatprep.mubr.bf16.mxu0 0
    %307 = vmatmul.mubr.bf16.gmra.mrb[0].mxu0 %v272
    %v308 = vpop.f32.mrb[0].mxu0
    %v309 = vadd.f32 %v248, %v308
    %v310 = vpop.f32.mrb[0].mxu0
    %v311 = vadd.f32 %v250, %v310
    %v312 = vpop.f32.mrb[0].mxu0
    %v313 = vadd.f32 %v252, %v312
    %v314 = vpop.f32.mrb[0].mxu0
    %v315 = vadd.f32 %v254, %v314
    %316 = vdwg.mxu0
    %v317 = vpack.c.bf16 %v313, %v309
    %v318 = vpack.c.bf16 %v315, %v311
    %v319 = vld [vmem:[#allocation8] sm:$0xff]
    %v320 = vld [vmem:[#allocation8 + $0x8] sm:$0xff]
    %v321 = vld [vmem:[#allocation8 + $0x10] sm:$0xff]
    %v322 = vld [vmem:[#allocation8 + $0x18] sm:$0xff]
    %v323 = vld [vmem:[#allocation8 + $0x20] sm:$0xff]
    %v324 = vld [vmem:[#allocation8 + $0x28] sm:$0xff]
    %v325 = vld [vmem:[#allocation8 + $0x30] sm:$0xff]
    %v326 = vld [vmem:[#allocation8 + $0x38] sm:$0xff]
    %v327 = vld [vmem:[#allocation8 + $0x40] sm:$0xff]
    %v328 = vld [vmem:[#allocation8 + $0x48] sm:$0xff]
    %v329 = vld [vmem:[#allocation8 + $0x50] sm:$0xff]
    %v330 = vld [vmem:[#allocation8 + $0x58] sm:$0xff]
    %v331 = vld [vmem:[#allocation8 + $0x60] sm:$0xff]
    %v332 = vld [vmem:[#allocation8 + $0x68] sm:$0xff]
    %v333 = vld [vmem:[#allocation8 + $0x70] sm:$0xff]
    %v334 = vld [vmem:[#allocation8 + $0x78] sm:$0xff]
    %v335 = vld [vmem:[#allocation8 + $0x80] sm:$0xff]
    %v336 = vld [vmem:[#allocation8 + $0x88] sm:$0xff]
    %v337 = vld [vmem:[#allocation8 + $0x90] sm:$0xff]
    %v338 = vld [vmem:[#allocation8 + $0x98] sm:$0xff]
    %v339 = vld [vmem:[#allocation8 + $0xa0] sm:$0xff]
    %v340 = vld [vmem:[#allocation8 + $0xa8] sm:$0xff]
    %v341 = vld [vmem:[#allocation8 + $0xb0] sm:$0xff]
    %v342 = vld [vmem:[#allocation8 + $0xb8] sm:$0xff]
    %v343 = vld [vmem:[#allocation8 + $0xc0] sm:$0xff]
    %v344 = vld [vmem:[#allocation8 + $0xc8] sm:$0xff]
    %v345 = vld [vmem:[#allocation8 + $0xd0] sm:$0xff]
    %v346 = vld [vmem:[#allocation8 + $0xd8] sm:$0xff]
    %v347 = vld [vmem:[#allocation8 + $0xe0] sm:$0xff]
    %v348 = vld [vmem:[#allocation8 + $0xe8] sm:$0xff]
    %v349 = vld [vmem:[#allocation8 + $0xf0] sm:$0xff]
    %v350 = vld [vmem:[#allocation8 + $0xf8] sm:$0xff]
    %v351 = vld [vmem:[#allocation13] sm:$0xff]
    %v352 = vld [vmem:[#allocation13 + $0x8] sm:$0xff]
    %v353 = vld [vmem:[#allocation16] sm:$0xff]
    %v354 = vld [vmem:[#allocation16 + $0x8] sm:$0xff]
    %v357 = vunpack.c.l.b16 %v353
    %v358 = vunpack.c.h.b16 %v353
    %v359 = vunpack.c.l.b16 %v354
    %v360 = vunpack.c.h.b16 %v354
    %v361 = vpack.c.b16 %v359, %v357
    %v362 = vpack.c.b16 %v360, %v358
    %365 = vmatprep.subr.bf16.mxu0 %v362
    %366 = vmatpush1.bf16.msra.mxu0 %v361
    %367 = vmatprep.subr.bf16.mxu0 0
    %368 = vmatpush1.bf16.msra.mxu0 0
    %369 = vmatprep.subr.bf16.mxu0 0
    %370 = vmatpush1.bf16.msra.mxu0 0
    %371 = vmatprep.subr.bf16.mxu0 0
    %372 = vmatpush1.bf16.msra.mxu0 0
    %373 = vmatprep.subr.bf16.mxu0 0
    %374 = vmatpush1.bf16.msra.mxu0 0
    %375 = vmatprep.subr.bf16.mxu0 0
    %376 = vmatpush1.bf16.msra.mxu0 0
    %377 = vmatprep.subr.bf16.mxu0 0
    %378 = vmatpush1.bf16.msra.mxu0 0
    %379 = vmatprep.subr.bf16.mxu0 0
    %380 = vmatpush1.bf16.msra.mxu0 0
    %381 = vmatprep.subr.bf16.mxu0 0
    %382 = vmatpush1.bf16.msra.mxu0 0
    %383 = vmatprep.subr.bf16.mxu0 0
    %384 = vmatpush1.bf16.msra.mxu0 0
    %385 = vmatprep.subr.bf16.mxu0 0
    %386 = vmatpush1.bf16.msra.mxu0 0
    %387 = vmatprep.subr.bf16.mxu0 0
    %388 = vmatpush1.bf16.msra.mxu0 0
    %389 = vmatprep.subr.bf16.mxu0 0
    %390 = vmatpush1.bf16.msra.mxu0 0
    %391 = vmatprep.subr.bf16.mxu0 0
    %392 = vmatpush1.bf16.msra.mxu0 0
    %393 = vmatprep.subr.bf16.mxu0 0
    %394 = vmatpush1.bf16.msra.mxu0 0
    %395 = vmatprep.subr.bf16.mxu0 0
    %396 = vmatpush1.bf16.msra.mxu0 0
    %397 = vmatprep.mubr.bf16.mxu0 0
    %398 = vmatmul.mubr.bf16.gmra.mrb[0].mxu0 %v211
    %v399 = vpop.f32.mrb[0].mxu0
    %v400 = vadd.f32 0.0, %v399
    %v401 = vpop.f32.mrb[0].mxu0
    %v402 = vadd.f32 0.0, %v401
    %v403 = vpop.f32.mrb[0].mxu0
    %v404 = vadd.f32 0.0, %v403
    %v405 = vpop.f32.mrb[0].mxu0
    %v406 = vadd.f32 0.0, %v405
    %407 = vdwg.mxu0
    %v410 = vunpack.c.l.b16 %v351
    %v411 = vunpack.c.h.b16 %v351
    %v412 = vunpack.c.l.b16 %v352
    %v413 = vunpack.c.h.b16 %v352
    %v414 = vpack.c.b16 %v412, %v410
    %v415 = vpack.c.b16 %v413, %v411
    %418 = vmatprep.subr.bf16.mxu0 %v415
    %419 = vmatpush1.bf16.msra.mxu0 %v414
    %420 = vmatprep.subr.bf16.mxu0 0
    %421 = vmatpush1.bf16.msra.mxu0 0
    %422 = vmatprep.subr.bf16.mxu0 0
    %423 = vmatpush1.bf16.msra.mxu0 0
    %424 = vmatprep.subr.bf16.mxu0 0
    %425 = vmatpush1.bf16.msra.mxu0 0
    %426 = vmatprep.subr.bf16.mxu0 0
    %427 = vmatpush1.bf16.msra.mxu0 0
    %428 = vmatprep.subr.bf16.mxu0 0
    %429 = vmatpush1.bf16.msra.mxu0 0
    %430 = vmatprep.subr.bf16.mxu0 0
    %431 = vmatpush1.bf16.msra.mxu0 0
    %432 = vmatprep.subr.bf16.mxu0 0
    %433 = vmatpush1.bf16.msra.mxu0 0
    %434 = vmatprep.subr.bf16.mxu0 0
    %435 = vmatpush1.bf16.msra.mxu0 0
    %436 = vmatprep.subr.bf16.mxu0 0
    %437 = vmatpush1.bf16.msra.mxu0 0
    %438 = vmatprep.subr.bf16.mxu0 0
    %439 = vmatpush1.bf16.msra.mxu0 0
    %440 = vmatprep.subr.bf16.mxu0 0
    %441 = vmatpush1.bf16.msra.mxu0 0
    %442 = vmatprep.subr.bf16.mxu0 0
    %443 = vmatpush1.bf16.msra.mxu0 0
    %444 = vmatprep.subr.bf16.mxu0 0
    %445 = vmatpush1.bf16.msra.mxu0 0
    %446 = vmatprep.subr.bf16.mxu0 0
    %447 = vmatpush1.bf16.msra.mxu0 0
    %448 = vmatprep.subr.bf16.mxu0 0
    %449 = vmatpush1.bf16.msra.mxu0 0
    %450 = vmatprep.mubr.bf16.mxu0 0
    %451 = vmatmul.mubr.bf16.gmra.mrb[0].mxu0 %v272
    %v452 = vpop.f32.mrb[0].mxu0
    %v453 = vadd.f32 %v400, %v452
    %v454 = vpop.f32.mrb[0].mxu0
    %v455 = vadd.f32 %v402, %v454
    %v456 = vpop.f32.mrb[0].mxu0
    %v457 = vadd.f32 %v404, %v456
    %v458 = vpop.f32.mrb[0].mxu0
    %v459 = vadd.f32 %v406, %v458
    %460 = vdwg.mxu0
    %v461 = vpack.c.bf16 %v457, %v453
    %v462 = vpack.c.bf16 %v459, %v455
    %v463 = vld [vmem:[#allocation10] sm:$0xff]
    %v464 = vld [vmem:[#allocation10 + $0x8] sm:$0xff]
    %v465 = vld [vmem:[#allocation10 + $0x10] sm:$0xff]
    %v466 = vld [vmem:[#allocation10 + $0x18] sm:$0xff]
    %v467 = vld [vmem:[#allocation10 + $0x20] sm:$0xff]
    %v468 = vld [vmem:[#allocation10 + $0x28] sm:$0xff]
    %v469 = vld [vmem:[#allocation10 + $0x30] sm:$0xff]
    %v470 = vld [vmem:[#allocation10 + $0x38] sm:$0xff]
    %v471 = vld [vmem:[#allocation10 + $0x40] sm:$0xff]
    %v472 = vld [vmem:[#allocation10 + $0x48] sm:$0xff]
    %v473 = vld [vmem:[#allocation10 + $0x50] sm:$0xff]
    %v474 = vld [vmem:[#allocation10 + $0x58] sm:$0xff]
    %v475 = vld [vmem:[#allocation10 + $0x60] sm:$0xff]
    %v476 = vld [vmem:[#allocation10 + $0x68] sm:$0xff]
    %v477 = vld [vmem:[#allocation10 + $0x70] sm:$0xff]
    %v478 = vld [vmem:[#allocation10 + $0x78] sm:$0xff]
    %v479 = vld [vmem:[#allocation10 + $0x80] sm:$0xff]
    %v480 = vld [vmem:[#allocation10 + $0x88] sm:$0xff]
    %v481 = vld [vmem:[#allocation10 + $0x90] sm:$0xff]
    %v482 = vld [vmem:[#allocation10 + $0x98] sm:$0xff]
    %v483 = vld [vmem:[#allocation10 + $0xa0] sm:$0xff]
    %v484 = vld [vmem:[#allocation10 + $0xa8] sm:$0xff]
    %v485 = vld [vmem:[#allocation10 + $0xb0] sm:$0xff]
    %v486 = vld [vmem:[#allocation10 + $0xb8] sm:$0xff]
    %v487 = vld [vmem:[#allocation10 + $0xc0] sm:$0xff]
    %v488 = vld [vmem:[#allocation10 + $0xc8] sm:$0xff]
    %v489 = vld [vmem:[#allocation10 + $0xd0] sm:$0xff]
    %v490 = vld [vmem:[#allocation10 + $0xd8] sm:$0xff]
    %v491 = vld [vmem:[#allocation10 + $0xe0] sm:$0xff]
    %v492 = vld [vmem:[#allocation10 + $0xe8] sm:$0xff]
    %v493 = vld [vmem:[#allocation10 + $0xf0] sm:$0xff]
    %v494 = vld [vmem:[#allocation10 + $0xf8] sm:$0xff]
    %v527 = vunpack.c.l.b16 %v463
    %v528 = vunpack.c.h.b16 %v463
    %v529 = vunpack.c.l.b16 %v464
    %v530 = vunpack.c.h.b16 %v464
    %v531 = vunpack.c.l.b16 %v465
    %v532 = vunpack.c.h.b16 %v465
    %v533 = vunpack.c.l.b16 %v466
    %v534 = vunpack.c.h.b16 %v466
    %v535 = vunpack.c.l.b16 %v467
    %v536 = vunpack.c.h.b16 %v467
    %v537 = vunpack.c.l.b16 %v468
    %v538 = vunpack.c.h.b16 %v468
    %v539 = vunpack.c.l.b16 %v469
    %v540 = vunpack.c.h.b16 %v469
    %v541 = vunpack.c.l.b16 %v470
    %v542 = vunpack.c.h.b16 %v470
    %v543 = vunpack.c.l.b16 %v471
    %v544 = vunpack.c.h.b16 %v471
    %v545 = vunpack.c.l.b16 %v472
    %v546 = vunpack.c.h.b16 %v472
    %v547 = vunpack.c.l.b16 %v473
    %v548 = vunpack.c.h.b16 %v473
    %v549 = vunpack.c.l.b16 %v474
    %v550 = vunpack.c.h.b16 %v474
    %v551 = vunpack.c.l.b16 %v475
    %v552 = vunpack.c.h.b16 %v475
    %v553 = vunpack.c.l.b16 %v476
    %v554 = vunpack.c.h.b16 %v476
    %v555 = vunpack.c.l.b16 %v477
    %v556 = vunpack.c.h.b16 %v477
    %v557 = vunpack.c.l.b16 %v478
    %v558 = vunpack.c.h.b16 %v478
    %v559 = vunpack.c.l.b16 %v479
    %v560 = vunpack.c.h.b16 %v479
    %v561 = vunpack.c.l.b16 %v480
    %v562 = vunpack.c.h.b16 %v480
    %v563 = vunpack.c.l.b16 %v481
    %v564 = vunpack.c.h.b16 %v481
    %v565 = vunpack.c.l.b16 %v482
    %v566 = vunpack.c.h.b16 %v482
    %v567 = vunpack.c.l.b16 %v483
    %v568 = vunpack.c.h.b16 %v483
    %v569 = vunpack.c.l.b16 %v484
    %v570 = vunpack.c.h.b16 %v484
    %v571 = vunpack.c.l.b16 %v485
    %v572 = vunpack.c.h.b16 %v485
    %v573 = vunpack.c.l.b16 %v486
    %v574 = vunpack.c.h.b16 %v486
    %v575 = vunpack.c.l.b16 %v487
    %v576 = vunpack.c.h.b16 %v487
    %v577 = vunpack.c.l.b16 %v488
    %v578 = vunpack.c.h.b16 %v488
    %v579 = vunpack.c.l.b16 %v489
    %v580 = vunpack.c.h.b16 %v489
    %v581 = vunpack.c.l.b16 %v490
    %v582 = vunpack.c.h.b16 %v490
    %v583 = vunpack.c.l.b16 %v491
    %v584 = vunpack.c.h.b16 %v491
    %v585 = vunpack.c.l.b16 %v492
    %v586 = vunpack.c.h.b16 %v492
    %v587 = vunpack.c.l.b16 %v493
    %v588 = vunpack.c.h.b16 %v493
    %v589 = vunpack.c.l.b16 %v494
    %v590 = vunpack.c.h.b16 %v494
    %v591 = vpack.c.b16 %v529, %v527
    %v592 = vpack.c.b16 %v530, %v528
    %v593 = vpack.c.b16 %v533, %v531
    %v594 = vpack.c.b16 %v534, %v532
    %v595 = vpack.c.b16 %v537, %v535
    %v596 = vpack.c.b16 %v538, %v536
    %v597 = vpack.c.b16 %v541, %v539
    %v598 = vpack.c.b16 %v542, %v540
    %v599 = vpack.c.b16 %v545, %v543
    %v600 = vpack.c.b16 %v546, %v544
    %v601 = vpack.c.b16 %v549, %v547
    %v602 = vpack.c.b16 %v550, %v548
    %v603 = vpack.c.b16 %v553, %v551
    %v604 = vpack.c.b16 %v554, %v552
    %v605 = vpack.c.b16 %v557, %v555
    %v606 = vpack.c.b16 %v558, %v556
    %v607 = vpack.c.b16 %v561, %v559
    %v608 = vpack.c.b16 %v562, %v560
    %v609 = vpack.c.b16 %v565, %v563
    %v610 = vpack.c.b16 %v566, %v564
    %v611 = vpack.c.b16 %v569, %v567
    %v612 = vpack.c.b16 %v570, %v568
    %v613 = vpack.c.b16 %v573, %v571
    %v614 = vpack.c.b16 %v574, %v572
    %v615 = vpack.c.b16 %v577, %v575
    %v616 = vpack.c.b16 %v578, %v576
    %v617 = vpack.c.b16 %v581, %v579
    %v618 = vpack.c.b16 %v582, %v580
    %v619 = vpack.c.b16 %v585, %v583
    %v620 = vpack.c.b16 %v586, %v584
    %v621 = vpack.c.b16 %v589, %v587
    %v622 = vpack.c.b16 %v590, %v588
    %655 = vmatprep.subr.bf16.mxu0 %v592
    %656 = vmatpush1.bf16.msra.mxu0 %v591
    %657 = vmatprep.subr.bf16.mxu0 %v594
    %658 = vmatpush1.bf16.msra.mxu0 %v593
    %659 = vmatprep.subr.bf16.mxu0 %v596
    %660 = vmatpush1.bf16.msra.mxu0 %v595
    %661 = vmatprep.subr.bf16.mxu0 %v598
    %662 = vmatpush1.bf16.msra.mxu0 %v597
    %663 = vmatprep.subr.bf16.mxu0 %v600
    %664 = vmatpush1.bf16.msra.mxu0 %v599
    %665 = vmatprep.subr.bf16.mxu0 %v602
    %666 = vmatpush1.bf16.msra.mxu0 %v601
    %667 = vmatprep.subr.bf16.mxu0 %v604
    %668 = vmatpush1.bf16.msra.mxu0 %v603
    %669 = vmatprep.subr.bf16.mxu0 %v606
    %670 = vmatpush1.bf16.msra.mxu0 %v605
    %671 = vmatprep.subr.bf16.mxu0 %v608
    %672 = vmatpush1.bf16.msra.mxu0 %v607
    %673 = vmatprep.subr.bf16.mxu0 %v610
    %674 = vmatpush1.bf16.msra.mxu0 %v609
    %675 = vmatprep.subr.bf16.mxu0 %v612
    %676 = vmatpush1.bf16.msra.mxu0 %v611
    %677 = vmatprep.subr.bf16.mxu0 %v614
    %678 = vmatpush1.bf16.msra.mxu0 %v613
    %679 = vmatprep.subr.bf16.mxu0 %v616
    %680 = vmatpush1.bf16.msra.mxu0 %v615
    %681 = vmatprep.subr.bf16.mxu0 %v618
    %682 = vmatpush1.bf16.msra.mxu0 %v617
    %683 = vmatprep.subr.bf16.mxu0 %v620
    %684 = vmatpush1.bf16.msra.mxu0 %v619
    %685 = vmatprep.subr.bf16.mxu0 %v622
    %686 = vmatpush1.bf16.msra.mxu0 %v621
    %687 = vmatprep.mubr.bf16.mxu0 %v462
    %688 = vmatmul.mubr.bf16.gmra.mrb[0].mxu0 %v461
    %v689 = vpop.f32.mrb[0].mxu0
    %v690 = vadd.f32 0.0, %v689
    %v691 = vpop.f32.mrb[0].mxu0
    %v692 = vadd.f32 0.0, %v691
    %v693 = vpop.f32.mrb[0].mxu0
    %v694 = vadd.f32 0.0, %v693
    %v695 = vpop.f32.mrb[0].mxu0
    %v696 = vadd.f32 0.0, %v695
    %697 = vdwg.mxu0
    %v730 = vunpack.c.l.b16 %v319
    %v731 = vunpack.c.h.b16 %v319
    %v732 = vunpack.c.l.b16 %v320
    %v733 = vunpack.c.h.b16 %v320
    %v734 = vunpack.c.l.b16 %v321
    %v735 = vunpack.c.h.b16 %v321
    %v736 = vunpack.c.l.b16 %v322
    %v737 = vunpack.c.h.b16 %v322
    %v738 = vunpack.c.l.b16 %v323
    %v739 = vunpack.c.h.b16 %v323
    %v740 = vunpack.c.l.b16 %v324
    %v741 = vunpack.c.h.b16 %v324
    %v742 = vunpack.c.l.b16 %v325
    %v743 = vunpack.c.h.b16 %v325
    %v744 = vunpack.c.l.b16 %v326
    %v745 = vunpack.c.h.b16 %v326
    %v746 = vunpack.c.l.b16 %v327
    %v747 = vunpack.c.h.b16 %v327
    %v748 = vunpack.c.l.b16 %v328
    %v749 = vunpack.c.h.b16 %v328
    %v750 = vunpack.c.l.b16 %v329
    %v751 = vunpack.c.h.b16 %v329
    %v752 = vunpack.c.l.b16 %v330
    %v753 = vunpack.c.h.b16 %v330
    %v754 = vunpack.c.l.b16 %v331
    %v755 = vunpack.c.h.b16 %v331
    %v756 = vunpack.c.l.b16 %v332
    %v757 = vunpack.c.h.b16 %v332
    %v758 = vunpack.c.l.b16 %v333
    %v759 = vunpack.c.h.b16 %v333
    %v760 = vunpack.c.l.b16 %v334
    %v761 = vunpack.c.h.b16 %v334
    %v762 = vunpack.c.l.b16 %v335
    %v763 = vunpack.c.h.b16 %v335
    %v764 = vunpack.c.l.b16 %v336
    %v765 = vunpack.c.h.b16 %v336
    %v766 = vunpack.c.l.b16 %v337
    %v767 = vunpack.c.h.b16 %v337
    %v768 = vunpack.c.l.b16 %v338
    %v769 = vunpack.c.h.b16 %v338
    %v770 = vunpack.c.l.b16 %v339
    %v771 = vunpack.c.h.b16 %v339
    %v772 = vunpack.c.l.b16 %v340
    %v773 = vunpack.c.h.b16 %v340
    %v774 = vunpack.c.l.b16 %v341
    %v775 = vunpack.c.h.b16 %v341
    %v776 = vunpack.c.l.b16 %v342
    %v777 = vunpack.c.h.b16 %v342
    %v778 = vunpack.c.l.b16 %v343
    %v779 = vunpack.c.h.b16 %v343
    %v780 = vunpack.c.l.b16 %v344
    %v781 = vunpack.c.h.b16 %v344
    %v782 = vunpack.c.l.b16 %v345
    %v783 = vunpack.c.h.b16 %v345
    %v784 = vunpack.c.l.b16 %v346
    %v785 = vunpack.c.h.b16 %v346
    %v786 = vunpack.c.l.b16 %v347
    %v787 = vunpack.c.h.b16 %v347
    %v788 = vunpack.c.l.b16 %v348
    %v789 = vunpack.c.h.b16 %v348
    %v790 = vunpack.c.l.b16 %v349
    %v791 = vunpack.c.h.b16 %v349
    %v792 = vunpack.c.l.b16 %v350
    %v793 = vunpack.c.h.b16 %v350
    %v794 = vpack.c.b16 %v732, %v730
    %v795 = vpack.c.b16 %v733, %v731
    %v796 = vpack.c.b16 %v736, %v734
    %v797 = vpack.c.b16 %v737, %v735
    %v798 = vpack.c.b16 %v740, %v738
    %v799 = vpack.c.b16 %v741, %v739
    %v800 = vpack.c.b16 %v744, %v742
    %v801 = vpack.c.b16 %v745, %v743
    %v802 = vpack.c.b16 %v748, %v746
    %v803 = vpack.c.b16 %v749, %v747
    %v804 = vpack.c.b16 %v752, %v750
    %v805 = vpack.c.b16 %v753, %v751
    %v806 = vpack.c.b16 %v756, %v754
    %v807 = vpack.c.b16 %v757, %v755
    %v808 = vpack.c.b16 %v760, %v758
    %v809 = vpack.c.b16 %v761, %v759
    %v810 = vpack.c.b16 %v764, %v762
    %v811 = vpack.c.b16 %v765, %v763
    %v812 = vpack.c.b16 %v768, %v766
    %v813 = vpack.c.b16 %v769, %v767
    %v814 = vpack.c.b16 %v772, %v770
    %v815 = vpack.c.b16 %v773, %v771
    %v816 = vpack.c.b16 %v776, %v774
    %v817 = vpack.c.b16 %v777, %v775
    %v818 = vpack.c.b16 %v780, %v778
    %v819 = vpack.c.b16 %v781, %v779
    %v820 = vpack.c.b16 %v784, %v782
    %v821 = vpack.c.b16 %v785, %v783
    %v822 = vpack.c.b16 %v788, %v786
    %v823 = vpack.c.b16 %v789, %v787
    %v824 = vpack.c.b16 %v792, %v790
    %v825 = vpack.c.b16 %v793, %v791
    %858 = vmatprep.subr.bf16.mxu0 %v795
    %859 = vmatpush1.bf16.msra.mxu0 %v794
    %860 = vmatprep.subr.bf16.mxu0 %v797
    %861 = vmatpush1.bf16.msra.mxu0 %v796
    %862 = vmatprep.subr.bf16.mxu0 %v799
    %863 = vmatpush1.bf16.msra.mxu0 %v798
    %864 = vmatprep.subr.bf16.mxu0 %v801
    %865 = vmatpush1.bf16.msra.mxu0 %v800
    %866 = vmatprep.subr.bf16.mxu0 %v803
    %867 = vmatpush1.bf16.msra.mxu0 %v802
    %868 = vmatprep.subr.bf16.mxu0 %v805
    %869 = vmatpush1.bf16.msra.mxu0 %v804
    %870 = vmatprep.subr.bf16.mxu0 %v807
    %871 = vmatpush1.bf16.msra.mxu0 %v806
    %872 = vmatprep.subr.bf16.mxu0 %v809
    %873 = vmatpush1.bf16.msra.mxu0 %v808
    %874 = vmatprep.subr.bf16.mxu0 %v811
    %875 = vmatpush1.bf16.msra.mxu0 %v810
    %876 = vmatprep.subr.bf16.mxu0 %v813
    %877 = vmatpush1.bf16.msra.mxu0 %v812
    %878 = vmatprep.subr.bf16.mxu0 %v815
    %879 = vmatpush1.bf16.msra.mxu0 %v814
    %880 = vmatprep.subr.bf16.mxu0 %v817
    %881 = vmatpush1.bf16.msra.mxu0 %v816
    %882 = vmatprep.subr.bf16.mxu0 %v819
    %883 = vmatpush1.bf16.msra.mxu0 %v818
    %884 = vmatprep.subr.bf16.mxu0 %v821
    %885 = vmatpush1.bf16.msra.mxu0 %v820
    %886 = vmatprep.subr.bf16.mxu0 %v823
    %887 = vmatpush1.bf16.msra.mxu0 %v822
    %888 = vmatprep.subr.bf16.mxu0 %v825
    %889 = vmatpush1.bf16.msra.mxu0 %v824
    %890 = vmatprep.mubr.bf16.mxu0 %v318
    %891 = vmatmul.mubr.bf16.gmra.mrb[0].mxu0 %v317
    %v892 = vpop.f32.mrb[0].mxu0
    %v893 = vadd.f32 %v690, %v892
    %v894 = vpop.f32.mrb[0].mxu0
    %v895 = vadd.f32 %v692, %v894
    %v896 = vpop.f32.mrb[0].mxu0
    %v897 = vadd.f32 %v694, %v896
    %v898 = vpop.f32.mrb[0].mxu0
    %v899 = vadd.f32 %v696, %v898
    %900 = vdwg.mxu0
    %901 = vst [vmem:[#allocation17] sm:$0xff] %v893
    %902 = vst [vmem:[#allocation17 + $0x8] sm:$0xff] %v895
    %903 = vst [vmem:[#allocation17 + $0x10] sm:$0xff] %v897
    %904 = vst [vmem:[#allocation17 + $0x18] sm:$0xff] %v899
    // Predicated region
    $region62: #{tpu_custom_call.1} parent=1 // pred_check
      _
    $region63: #{tpu_custom_call.1} parent=1 // pred_check_branch
      %906 = sbr.rel (0) target = $region65
    $region64: #{tpu_custom_call.1} parent=1 // pred_region
      %s908 = ssub.s32 512, 512
      %909 = vsyncadd [#allocation7], %s908
      %s910 = sshll.u32 [#allocation17], 4
      %s911 = int_to_ptr.vmem [resolvable:$true] %s910
      %916 = dma.vmem_to_hbm [thread:$0]  %s911, 512, %s10, [#allocation7], 256, 256, 16
    $region65: #{tpu_custom_call.1} parent=1 // pred_fallthru
      _
    // Predicated region
    $region66: #{tpu_custom_call.1} parent=1 // pred_check
      _
    $region67: #{tpu_custom_call.1} parent=1 // pred_check_branch
      %918 = sbr.rel (0) target = $region69
    $region68: #{tpu_custom_call.1} parent=1 // pred_region
      %919 = dma.done [#allocation7], 512
    $region69: #{tpu_custom_call.1} parent=1 // pred_fallthru
      _
    %920 = vsyncpa [#allocation6], 1
    %921 = vsyncpa [#allocation9], 1
    %922 = vsyncpa [#allocation12], 1
    %923 = vsyncpa [#allocation15], 1
    %924 = vsyncpa [#allocation7], 1

</llo_original>
